<compile_context>
chip_gen: v6e
topology: v6e:2x2x1
jax: 0.10.0
libtpu: 0.0.40
codegen_flags: <defaults>
</compile_context>

<pallas_src>
import functools

import jax
import jax.numpy as jnp
from jax.experimental import pallas as pl
from jax.experimental.pallas import tpu as pltpu


# ----------------------------- Pallas kernel -----------------------------

def _decoder_kernel(T, D, enc_ref, hist_ref,
                    wh_ref, bh_ref, wc_ref, bc_ref,
                    wie_e_ref, wie_h_ref, bie_ref,
                    wih_ref, whh_ref, bl_ref,
                    wp_ref, bp_ref,
                    o_ref):
    f32, bf16 = jnp.float32, jnp.bfloat16

    enc = enc_ref[...]                                   # (B, E)                bf16
    hist = hist_ref[...]                                 # (B, 2*(positions+1))  bf16

    # init_hidden_state: h = init_h(history_positions), c = init_c(encoder_out)
    h = jnp.dot(hist, wh_ref[...], preferred_element_type=f32) + bh_ref[...]   # (B, D) f32
    c = jnp.dot(enc, wc_ref[...], preferred_element_type=f32) + bc_ref[...]    # (B, D) f32

    # TODO(synk): the original forward calls torch.cat([encoder_out, h]) along dim=0,
    # which is shape-inconsistent with input_encoder = Linear(encoder_dim + decoder_dim,
    # input_dim); the shape-consistent feature-dim concat is implemented (and folded) here.

    # ---- loop-invariant folding: input_encoder (pure Linear) folds exactly into the
    # LSTM gate pre-activations; both terms below are computed once, outside the T-loop.
    wih = wih_ref[...]                                   # (I, 4D) bf16
    inp_const = jnp.dot(enc, wie_e_ref[...], preferred_element_type=f32) + bie_ref[...]
    gates_const = (jnp.dot(inp_const.astype(bf16), wih, preferred_element_type=f32)
                   + bl_ref[...])                        # (B, 4D) f32, encoder-driven part
    w_h_gates = (jnp.dot(wie_h_ref[...], wih, preferred_element_type=f32)
                 + whh_ref[...]).astype(bf16)            # (D, 4D) fused h->gates weight

    wp = wp_ref[...]                                     # (D, 2) bf16
    bp = bp_ref[...]                                     # (1, 2) f32

    preds = []
    for _ in range(T):                                   # T is small & static: unrolled
        gates = gates_const + jnp.dot(h.astype(bf16), w_h_gates,
                                      preferred_element_type=f32)              # (B, 4D)
        # nn.LSTMCell gate order (i, f, g, o); 4*D == 128 -> one full-width sigmoid.
        sig = jax.nn.sigmoid(gates)
        i_g = sig[:, 0 * D:1 * D]
        f_g = sig[:, 1 * D:2 * D]
        o_g = sig[:, 3 * D:4 * D]
        g_g = jnp.tanh(gates[:, 2 * D:3 * D])
        c = f_g * c + i_g * g_g
        h = o_g * jnp.tanh(c)
        preds.append(jnp.dot(h.astype(bf16), wp, preferred_element_type=f32) + bp)
    # torch.concat(outputs, dim=1): single store of all T predictions.
    o_ref[...] = jnp.concatenate(preds, axis=1)          # (B, 2*T)


# ------------------------------- wrapper ----------------------------------

def pallas_decoder(encoder_out, history_positions, params, prediction_length, decoder_dim):
    """Decoder.forward(encoder_out, history_positions) -> (B, 2*prediction_length)."""
    B, E = encoder_out.shape
    T, D = prediction_length, decoder_dim

    bf16 = lambda a: jnp.asarray(a, jnp.bfloat16)
    f32 = lambda a: jnp.asarray(a, jnp.float32)

    # One-time parameter prep (would be done once at model-load time in deployment).
    w_ie = params['w_ie']                                # (E + D, I)
    args = (
        bf16(encoder_out), bf16(history_positions),
        bf16(params['w_init_h']), f32(params['b_init_h']),
        bf16(params['w_init_c']), f32(params['b_init_c']),
        bf16(w_ie[:E]), bf16(w_ie[E:]), f32(params['b_ie']),
        bf16(params['w_lstm_ih']), f32(params['w_lstm_hh']), f32(params['b_lstm']),
        bf16(params['w_pred']), f32(params['b_pred']),
    )

    kernel = functools.partial(_decoder_kernel, T, D)
    vmem = pl.BlockSpec(memory_space=pltpu.MemorySpace.VMEM)
    return pl.pallas_call(
        kernel,
        out_shape=jax.ShapeDtypeStruct((B, 2 * T), jnp.float32),
        in_specs=[vmem] * len(args),
        out_specs=vmem,
    )(*args)


# -------------------------- pure-JAX reference -----------------------------

def decoder_reference(enc, hist, p, T):
    """Unfolded f32 reference of Decoder.forward (feature-dim concat semantics)."""
    h = hist @ p['w_init_h'] + p['b_init_h']
    c = enc @ p['w_init_c'] + p['b_init_c']
    D = h.shape[1]
    outs = []
    for _ in range(T):
        x = jnp.concatenate([enc, h], axis=1)
        inp = x @ p['w_ie'] + p['b_ie']
        gates = inp @ p['w_lstm_ih'] + h @ p['w_lstm_hh'] + p['b_lstm']
        i_g = jax.nn.sigmoid(gates[:, 0 * D:1 * D])
        f_g = jax.nn.sigmoid(gates[:, 1 * D:2 * D])
        g_g = jnp.tanh(gates[:, 2 * D:3 * D])
        o_g = jax.nn.sigmoid(gates[:, 3 * D:4 * D])
        c = f_g * c + i_g * g_g
        h = o_g * jnp.tanh(c)
        outs.append(h @ p['w_pred'] + p['b_pred'])
    return jnp.concatenate(outs, axis=1)


# ---------------------------------- main ------------------------------------

if __name__ == "__main__":
    batch = 2
    positions = 10                 # Decoder internally uses positions + 1
    n_pos = positions + 1
    decoder_dim = 32
    encoder_dim = 32
    input_dim = 32
    prediction_length = 5

    key = jax.random.PRNGKey(0)
    ks = jax.random.split(key, 16)

    def init(k, shape, scale=0.1):
        return scale * jax.random.normal(k, shape, dtype=jnp.float32)

    D = decoder_dim
    params = {
        'w_init_h': init(ks[0], (n_pos * 2, D)),
        'b_init_h': init(ks[1], (1, D)),
        'w_init_c': init(ks[2], (encoder_dim, D)),
        'b_init_c': init(ks[3], (1, D)),
        'w_ie': init(ks[4], (encoder_dim + D, input_dim)),
        'b_ie': init(ks[5], (1, input_dim)),
        'w_lstm_ih': init(ks[6], (input_dim, 4 * D)),
        'w_lstm_hh': init(ks[7], (D, 4 * D)),
        # PyTorch LSTMCell adds bias_ih + bias_hh; fold both into one bias.
        'b_lstm': init(ks[8], (1, 4 * D)) + init(ks[9], (1, 4 * D)),
        'w_pred': init(ks[10], (D, 2)),
        'b_pred': init(ks[11], (1, 2)),
    }

    encoder_out = jax.random.normal(ks[12], (batch, encoder_dim), dtype=jnp.float32)
    history_positions = jax.random.normal(ks[13], (batch, n_pos, 2), dtype=jnp.float32)
    hist_flat = history_positions.reshape(batch, -1)     # (B, 2*(positions+1))

    out = pallas_decoder(encoder_out, hist_flat, params, prediction_length, decoder_dim)
    out = jax.block_until_ready(out)
    assert out.shape == (batch, 2 * prediction_length)

    ref = decoder_reference(encoder_out, hist_flat, params, prediction_length)
    assert bool(jnp.allclose(out, ref, atol=2e-2, rtol=2e-2)), "mismatch vs f32 reference"
    print("KERNEL_OK")
</pallas_src>

<mosaic_0001>
module attributes {stable_mosaic.version = 11 : i64} {
  func.func @_decoder_kernel(%arg0: memref<2x32xbf16, #tpu.memory_space<vmem>>, %arg1: memref<2x22xbf16, #tpu.memory_space<vmem>>, %arg2: memref<22x32xbf16, #tpu.memory_space<vmem>>, %arg3: memref<1x32xf32, #tpu.memory_space<vmem>>, %arg4: memref<32x32xbf16, #tpu.memory_space<vmem>>, %arg5: memref<1x32xf32, #tpu.memory_space<vmem>>, %arg6: memref<32x32xbf16, #tpu.memory_space<vmem>>, %arg7: memref<32x32xbf16, #tpu.memory_space<vmem>>, %arg8: memref<1x32xf32, #tpu.memory_space<vmem>>, %arg9: memref<32x128xbf16, #tpu.memory_space<vmem>>, %arg10: memref<32x128xf32, #tpu.memory_space<vmem>>, %arg11: memref<1x128xf32, #tpu.memory_space<vmem>>, %arg12: memref<32x2xbf16, #tpu.memory_space<vmem>>, %arg13: memref<1x2xf32, #tpu.memory_space<vmem>>, %arg14: memref<2x10xf32, #tpu.memory_space<vmem>>) attributes {dimension_semantics = [], scalar_prefetch = 0 : i64, scratch_operands = 0 : i64, tpu.core_type = #tpu.core_type<tc>} {
    %c0 = arith.constant 0 : index
    %c0_0 = arith.constant 0 : index
    %0 = vector.load %arg0[%c0, %c0_0] : memref<2x32xbf16, #tpu.memory_space<vmem>>, vector<2x32xbf16>
    %c0_1 = arith.constant 0 : index
    %c0_2 = arith.constant 0 : index
    %1 = vector.load %arg1[%c0_1, %c0_2] : memref<2x22xbf16, #tpu.memory_space<vmem>>, vector<2x22xbf16>
    %c0_3 = arith.constant 0 : index
    %c0_4 = arith.constant 0 : index
    %2 = vector.load %arg2[%c0_3, %c0_4] : memref<22x32xbf16, #tpu.memory_space<vmem>>, vector<22x32xbf16>
    %cst = arith.constant dense<0.000000e+00> : vector<2x32xf32>
    %3 = tpu.matmul %1, %2, %cst {dimension_numbers = #tpu.dot_dimension_numbers<[1], [0], [0], [1], [0, 0, 1, 1], [], []>} : vector<2x22xbf16>, vector<22x32xbf16>, vector<2x32xf32> -> vector<2x32xf32>
    %c0_5 = arith.constant 0 : index
    %c0_6 = arith.constant 0 : index
    %4 = vector.load %arg3[%c0_5, %c0_6] : memref<1x32xf32, #tpu.memory_space<vmem>>, vector<1x32xf32>
    %5 = vector.broadcast %4 : vector<1x32xf32> to vector<2x32xf32>
    %6 = arith.addf %3, %5 : vector<2x32xf32>
    %c0_7 = arith.constant 0 : index
    %c0_8 = arith.constant 0 : index
    %7 = vector.load %arg4[%c0_7, %c0_8] : memref<32x32xbf16, #tpu.memory_space<vmem>>, vector<32x32xbf16>
    %cst_9 = arith.constant dense<0.000000e+00> : vector<2x32xf32>
    %8 = tpu.matmul %0, %7, %cst_9 {dimension_numbers = #tpu.dot_dimension_numbers<[1], [0], [0], [1], [0, 0, 1, 1], [], []>} : vector<2x32xbf16>, vector<32x32xbf16>, vector<2x32xf32> -> vector<2x32xf32>
    %c0_10 = arith.constant 0 : index
    %c0_11 = arith.constant 0 : index
    %9 = vector.load %arg5[%c0_10, %c0_11] : memref<1x32xf32, #tpu.memory_space<vmem>>, vector<1x32xf32>
    %10 = vector.broadcast %9 : vector<1x32xf32> to vector<2x32xf32>
    %11 = arith.addf %8, %10 : vector<2x32xf32>
    %c0_12 = arith.constant 0 : index
    %c0_13 = arith.constant 0 : index
    %12 = vector.load %arg9[%c0_12, %c0_13] : memref<32x128xbf16, #tpu.memory_space<vmem>>, vector<32x128xbf16>
    %c0_14 = arith.constant 0 : index
    %c0_15 = arith.constant 0 : index
    %13 = vector.load %arg6[%c0_14, %c0_15] : memref<32x32xbf16, #tpu.memory_space<vmem>>, vector<32x32xbf16>
    %cst_16 = arith.constant dense<0.000000e+00> : vector<2x32xf32>
    %14 = tpu.matmul %0, %13, %cst_16 {dimension_numbers = #tpu.dot_dimension_numbers<[1], [0], [0], [1], [0, 0, 1, 1], [], []>} : vector<2x32xbf16>, vector<32x32xbf16>, vector<2x32xf32> -> vector<2x32xf32>
    %c0_17 = arith.constant 0 : index
    %c0_18 = arith.constant 0 : index
    %15 = vector.load %arg8[%c0_17, %c0_18] : memref<1x32xf32, #tpu.memory_space<vmem>>, vector<1x32xf32>
    %16 = vector.broadcast %15 : vector<1x32xf32> to vector<2x32xf32>
    %17 = arith.addf %14, %16 : vector<2x32xf32>
    %18 = arith.truncf %17 : vector<2x32xf32> to vector<2x32xbf16>
    %cst_19 = arith.constant dense<0.000000e+00> : vector<2x128xf32>
    %19 = tpu.matmul %18, %12, %cst_19 {dimension_numbers = #tpu.dot_dimension_numbers<[1], [0], [0], [1], [0, 0, 1, 1], [], []>} : vector<2x32xbf16>, vector<32x128xbf16>, vector<2x128xf32> -> vector<2x128xf32>
    %c0_20 = arith.constant 0 : index
    %c0_21 = arith.constant 0 : index
    %20 = vector.load %arg11[%c0_20, %c0_21] : memref<1x128xf32, #tpu.memory_space<vmem>>, vector<1x128xf32>
    %21 = vector.broadcast %20 : vector<1x128xf32> to vector<2x128xf32>
    %22 = arith.addf %19, %21 : vector<2x128xf32>
    %c0_22 = arith.constant 0 : index
    %c0_23 = arith.constant 0 : index
    %23 = vector.load %arg7[%c0_22, %c0_23] : memref<32x32xbf16, #tpu.memory_space<vmem>>, vector<32x32xbf16>
    %cst_24 = arith.constant dense<0.000000e+00> : vector<32x128xf32>
    %24 = tpu.matmul %23, %12, %cst_24 {dimension_numbers = #tpu.dot_dimension_numbers<[1], [0], [0], [1], [0, 0, 1, 1], [], []>} : vector<32x32xbf16>, vector<32x128xbf16>, vector<32x128xf32> -> vector<32x128xf32>
    %c0_25 = arith.constant 0 : index
    %c0_26 = arith.constant 0 : index
    %25 = vector.load %arg10[%c0_25, %c0_26] : memref<32x128xf32, #tpu.memory_space<vmem>>, vector<32x128xf32>
    %26 = arith.addf %24, %25 : vector<32x128xf32>
    %27 = arith.truncf %26 : vector<32x128xf32> to vector<32x128xbf16>
    %c0_27 = arith.constant 0 : index
    %c0_28 = arith.constant 0 : index
    %28 = vector.load %arg12[%c0_27, %c0_28] : memref<32x2xbf16, #tpu.memory_space<vmem>>, vector<32x2xbf16>
    %c0_29 = arith.constant 0 : index
    %c0_30 = arith.constant 0 : index
    %29 = vector.load %arg13[%c0_29, %c0_30] : memref<1x2xf32, #tpu.memory_space<vmem>>, vector<1x2xf32>
    %30 = arith.truncf %6 : vector<2x32xf32> to vector<2x32xbf16>
    %cst_31 = arith.constant dense<0.000000e+00> : vector<2x128xf32>
    %31 = tpu.matmul %30, %27, %cst_31 {dimension_numbers = #tpu.dot_dimension_numbers<[1], [0], [0], [1], [0, 0, 1, 1], [], []>} : vector<2x32xbf16>, vector<32x128xbf16>, vector<2x128xf32> -> vector<2x128xf32>
    %32 = arith.addf %22, %31 : vector<2x128xf32>
    %33 = arith.negf %32 : vector<2x128xf32>
    %34 = math.exp %33 : vector<2x128xf32>
    %cst_32 = arith.constant 1.000000e+00 : f32
    %35 = vector.broadcast %cst_32 : f32 to vector<2x128xf32>
    %36 = arith.addf %35, %34 : vector<2x128xf32>
    %37 = arith.divf %35, %36 : vector<2x128xf32>
    %38 = vector.extract_strided_slice %37 {offsets = [0, 0], sizes = [2, 32], strides = [1, 1]} : vector<2x128xf32> to vector<2x32xf32>
    %39 = vector.extract_strided_slice %37 {offsets = [0, 32], sizes = [2, 32], strides = [1, 1]} : vector<2x128xf32> to vector<2x32xf32>
    %40 = vector.extract_strided_slice %37 {offsets = [0, 96], sizes = [2, 32], strides = [1, 1]} : vector<2x128xf32> to vector<2x32xf32>
    %41 = vector.extract_strided_slice %32 {offsets = [0, 64], sizes = [2, 32], strides = [1, 1]} : vector<2x128xf32> to vector<2x32xf32>
    %42 = math.tanh %41 : vector<2x32xf32>
    %43 = arith.mulf %39, %11 : vector<2x32xf32>
    %44 = arith.mulf %38, %42 : vector<2x32xf32>
    %45 = arith.addf %43, %44 : vector<2x32xf32>
    %46 = math.tanh %45 : vector<2x32xf32>
    %47 = arith.mulf %40, %46 : vector<2x32xf32>
    %48 = arith.truncf %47 : vector<2x32xf32> to vector<2x32xbf16>
    %cst_33 = arith.constant dense<0.000000e+00> : vector<2x2xf32>
    %49 = tpu.matmul %48, %28, %cst_33 {dimension_numbers = #tpu.dot_dimension_numbers<[1], [0], [0], [1], [0, 0, 1, 1], [], []>} : vector<2x32xbf16>, vector<32x2xbf16>, vector<2x2xf32> -> vector<2x2xf32>
    %50 = vector.broadcast %29 : vector<1x2xf32> to vector<2x2xf32>
    %51 = arith.addf %49, %50 : vector<2x2xf32>
    %52 = arith.truncf %47 : vector<2x32xf32> to vector<2x32xbf16>
    %cst_34 = arith.constant dense<0.000000e+00> : vector<2x128xf32>
    %53 = tpu.matmul %52, %27, %cst_34 {dimension_numbers = #tpu.dot_dimension_numbers<[1], [0], [0], [1], [0, 0, 1, 1], [], []>} : vector<2x32xbf16>, vector<32x128xbf16>, vector<2x128xf32> -> vector<2x128xf32>
    %54 = arith.addf %22, %53 : vector<2x128xf32>
    %55 = arith.negf %54 : vector<2x128xf32>
    %56 = math.exp %55 : vector<2x128xf32>
    %cst_35 = arith.constant 1.000000e+00 : f32
    %57 = vector.broadcast %cst_35 : f32 to vector<2x128xf32>
    %58 = arith.addf %57, %56 : vector<2x128xf32>
    %59 = arith.divf %57, %58 : vector<2x128xf32>
    %60 = vector.extract_strided_slice %59 {offsets = [0, 0], sizes = [2, 32], strides = [1, 1]} : vector<2x128xf32> to vector<2x32xf32>
    %61 = vector.extract_strided_slice %59 {offsets = [0, 32], sizes = [2, 32], strides = [1, 1]} : vector<2x128xf32> to vector<2x32xf32>
    %62 = vector.extract_strided_slice %59 {offsets = [0, 96], sizes = [2, 32], strides = [1, 1]} : vector<2x128xf32> to vector<2x32xf32>
    %63 = vector.extract_strided_slice %54 {offsets = [0, 64], sizes = [2, 32], strides = [1, 1]} : vector<2x128xf32> to vector<2x32xf32>
    %64 = math.tanh %63 : vector<2x32xf32>
    %65 = arith.mulf %61, %45 : vector<2x32xf32>
    %66 = arith.mulf %60, %64 : vector<2x32xf32>
    %67 = arith.addf %65, %66 : vector<2x32xf32>
    %68 = math.tanh %67 : vector<2x32xf32>
    %69 = arith.mulf %62, %68 : vector<2x32xf32>
    %70 = arith.truncf %69 : vector<2x32xf32> to vector<2x32xbf16>
    %cst_36 = arith.constant dense<0.000000e+00> : vector<2x2xf32>
    %71 = tpu.matmul %70, %28, %cst_36 {dimension_numbers = #tpu.dot_dimension_numbers<[1], [0], [0], [1], [0, 0, 1, 1], [], []>} : vector<2x32xbf16>, vector<32x2xbf16>, vector<2x2xf32> -> vector<2x2xf32>
    %72 = vector.broadcast %29 : vector<1x2xf32> to vector<2x2xf32>
    %73 = arith.addf %71, %72 : vector<2x2xf32>
    %74 = arith.truncf %69 : vector<2x32xf32> to vector<2x32xbf16>
    %cst_37 = arith.constant dense<0.000000e+00> : vector<2x128xf32>
    %75 = tpu.matmul %74, %27, %cst_37 {dimension_numbers = #tpu.dot_dimension_numbers<[1], [0], [0], [1], [0, 0, 1, 1], [], []>} : vector<2x32xbf16>, vector<32x128xbf16>, vector<2x128xf32> -> vector<2x128xf32>
    %76 = arith.addf %22, %75 : vector<2x128xf32>
    %77 = arith.negf %76 : vector<2x128xf32>
    %78 = math.exp %77 : vector<2x128xf32>
    %cst_38 = arith.constant 1.000000e+00 : f32
    %79 = vector.broadcast %cst_38 : f32 to vector<2x128xf32>
    %80 = arith.addf %79, %78 : vector<2x128xf32>
    %81 = arith.divf %79, %80 : vector<2x128xf32>
    %82 = vector.extract_strided_slice %81 {offsets = [0, 0], sizes = [2, 32], strides = [1, 1]} : vector<2x128xf32> to vector<2x32xf32>
    %83 = vector.extract_strided_slice %81 {offsets = [0, 32], sizes = [2, 32], strides = [1, 1]} : vector<2x128xf32> to vector<2x32xf32>
    %84 = vector.extract_strided_slice %81 {offsets = [0, 96], sizes = [2, 32], strides = [1, 1]} : vector<2x128xf32> to vector<2x32xf32>
    %85 = vector.extract_strided_slice %76 {offsets = [0, 64], sizes = [2, 32], strides = [1, 1]} : vector<2x128xf32> to vector<2x32xf32>
    %86 = math.tanh %85 : vector<2x32xf32>
    %87 = arith.mulf %83, %67 : vector<2x32xf32>
    %88 = arith.mulf %82, %86 : vector<2x32xf32>
    %89 = arith.addf %87, %88 : vector<2x32xf32>
    %90 = math.tanh %89 : vector<2x32xf32>
    %91 = arith.mulf %84, %90 : vector<2x32xf32>
    %92 = arith.truncf %91 : vector<2x32xf32> to vector<2x32xbf16>
    %cst_39 = arith.constant dense<0.000000e+00> : vector<2x2xf32>
    %93 = tpu.matmul %92, %28, %cst_39 {dimension_numbers = #tpu.dot_dimension_numbers<[1], [0], [0], [1], [0, 0, 1, 1], [], []>} : vector<2x32xbf16>, vector<32x2xbf16>, vector<2x2xf32> -> vector<2x2xf32>
    %94 = vector.broadcast %29 : vector<1x2xf32> to vector<2x2xf32>
    %95 = arith.addf %93, %94 : vector<2x2xf32>
    %96 = arith.truncf %91 : vector<2x32xf32> to vector<2x32xbf16>
    %cst_40 = arith.constant dense<0.000000e+00> : vector<2x128xf32>
    %97 = tpu.matmul %96, %27, %cst_40 {dimension_numbers = #tpu.dot_dimension_numbers<[1], [0], [0], [1], [0, 0, 1, 1], [], []>} : vector<2x32xbf16>, vector<32x128xbf16>, vector<2x128xf32> -> vector<2x128xf32>
    %98 = arith.addf %22, %97 : vector<2x128xf32>
    %99 = arith.negf %98 : vector<2x128xf32>
    %100 = math.exp %99 : vector<2x128xf32>
    %cst_41 = arith.constant 1.000000e+00 : f32
    %101 = vector.broadcast %cst_41 : f32 to vector<2x128xf32>
    %102 = arith.addf %101, %100 : vector<2x128xf32>
    %103 = arith.divf %101, %102 : vector<2x128xf32>
    %104 = vector.extract_strided_slice %103 {offsets = [0, 0], sizes = [2, 32], strides = [1, 1]} : vector<2x128xf32> to vector<2x32xf32>
    %105 = vector.extract_strided_slice %103 {offsets = [0, 32], sizes = [2, 32], strides = [1, 1]} : vector<2x128xf32> to vector<2x32xf32>
    %106 = vector.extract_strided_slice %103 {offsets = [0, 96], sizes = [2, 32], strides = [1, 1]} : vector<2x128xf32> to vector<2x32xf32>
    %107 = vector.extract_strided_slice %98 {offsets = [0, 64], sizes = [2, 32], strides = [1, 1]} : vector<2x128xf32> to vector<2x32xf32>
    %108 = math.tanh %107 : vector<2x32xf32>
    %109 = arith.mulf %105, %89 : vector<2x32xf32>
    %110 = arith.mulf %104, %108 : vector<2x32xf32>
    %111 = arith.addf %109, %110 : vector<2x32xf32>
    %112 = math.tanh %111 : vector<2x32xf32>
    %113 = arith.mulf %106, %112 : vector<2x32xf32>
    %114 = arith.truncf %113 : vector<2x32xf32> to vector<2x32xbf16>
    %cst_42 = arith.constant dense<0.000000e+00> : vector<2x2xf32>
    %115 = tpu.matmul %114, %28, %cst_42 {dimension_numbers = #tpu.dot_dimension_numbers<[1], [0], [0], [1], [0, 0, 1, 1], [], []>} : vector<2x32xbf16>, vector<32x2xbf16>, vector<2x2xf32> -> vector<2x2xf32>
    %116 = vector.broadcast %29 : vector<1x2xf32> to vector<2x2xf32>
    %117 = arith.addf %115, %116 : vector<2x2xf32>
    %118 = arith.truncf %113 : vector<2x32xf32> to vector<2x32xbf16>
    %cst_43 = arith.constant dense<0.000000e+00> : vector<2x128xf32>
    %119 = tpu.matmul %118, %27, %cst_43 {dimension_numbers = #tpu.dot_dimension_numbers<[1], [0], [0], [1], [0, 0, 1, 1], [], []>} : vector<2x32xbf16>, vector<32x128xbf16>, vector<2x128xf32> -> vector<2x128xf32>
    %120 = arith.addf %22, %119 : vector<2x128xf32>
    %121 = arith.negf %120 : vector<2x128xf32>
    %122 = math.exp %121 : vector<2x128xf32>
    %cst_44 = arith.constant 1.000000e+00 : f32
    %123 = vector.broadcast %cst_44 : f32 to vector<2x128xf32>
    %124 = arith.addf %123, %122 : vector<2x128xf32>
    %125 = arith.divf %123, %124 : vector<2x128xf32>
    %126 = vector.extract_strided_slice %125 {offsets = [0, 0], sizes = [2, 32], strides = [1, 1]} : vector<2x128xf32> to vector<2x32xf32>
    %127 = vector.extract_strided_slice %125 {offsets = [0, 32], sizes = [2, 32], strides = [1, 1]} : vector<2x128xf32> to vector<2x32xf32>
    %128 = vector.extract_strided_slice %125 {offsets = [0, 96], sizes = [2, 32], strides = [1, 1]} : vector<2x128xf32> to vector<2x32xf32>
    %129 = vector.extract_strided_slice %120 {offsets = [0, 64], sizes = [2, 32], strides = [1, 1]} : vector<2x128xf32> to vector<2x32xf32>
    %130 = math.tanh %129 : vector<2x32xf32>
    %131 = arith.mulf %127, %111 : vector<2x32xf32>
    %132 = arith.mulf %126, %130 : vector<2x32xf32>
    %133 = arith.addf %131, %132 : vector<2x32xf32>
    %134 = math.tanh %133 : vector<2x32xf32>
    %135 = arith.mulf %128, %134 : vector<2x32xf32>
    %136 = arith.truncf %135 : vector<2x32xf32> to vector<2x32xbf16>
    %cst_45 = arith.constant dense<0.000000e+00> : vector<2x2xf32>
    %137 = tpu.matmul %136, %28, %cst_45 {dimension_numbers = #tpu.dot_dimension_numbers<[1], [0], [0], [1], [0, 0, 1, 1], [], []>} : vector<2x32xbf16>, vector<32x2xbf16>, vector<2x2xf32> -> vector<2x2xf32>
    %138 = vector.broadcast %29 : vector<1x2xf32> to vector<2x2xf32>
    %139 = arith.addf %137, %138 : vector<2x2xf32>
    %140 = tpu.concatenate %51, %73, %95, %117, %139 in 1 : vector<2x2xf32>, vector<2x2xf32>, vector<2x2xf32>, vector<2x2xf32>, vector<2x2xf32> -> vector<2x10xf32>
    %c0_46 = arith.constant 0 : index
    %c0_47 = arith.constant 0 : index
    %141 = vector.load %arg14[%c0_46, %c0_47] : memref<2x10xf32, #tpu.memory_space<vmem>>, vector<2x10xf32>
    tpu.vector_store %arg14[%c0_46, %c0_47], %140 {strides = array<i32>} : memref<2x10xf32, #tpu.memory_space<vmem>>, vector<2x10xf32>,
    return
  }
}

</mosaic_0001>

<llo_original>
// kernel: tpu_custom_call.1
$region0: #{tpu_custom_call.1}
  #allocation0 [shape = 'u32[]', space=smem, size = 0x4, offset = 0x4, fixed_abs, tag = 'smem constant byte address 0x4 - core index']
  #allocation1 [shape = 'u32[144,128]{1,0:T(1,128)}', space=vmem, size = 0x12000, scoped, tag = 'internal scratch']
  %s0 = inlined_call_operand.vmem [shape: bf16[2,32], index: 0, kind: input, shape index: {}]
  %s1 = inlined_call_operand.vmem [shape: bf16[2,22], index: 1, kind: input, shape index: {}]
  %s2 = inlined_call_operand.hbm [shape: bf16[22,32], index: 2, kind: input, shape index: {}]
  %s3 = inlined_call_operand.vmem [shape: f32[1,32], index: 3, kind: input, shape index: {}]
  %s4 = inlined_call_operand.hbm [shape: bf16[32,32], index: 4, kind: input, shape index: {}]
  %s5 = inlined_call_operand.hbm [shape: f32[1,32], index: 5, kind: input, shape index: {}]
  %s6 = inlined_call_operand.hbm [shape: bf16[32,32], index: 6, kind: input, shape index: {}]
  %s7 = inlined_call_operand.hbm [shape: bf16[32,32], index: 7, kind: input, shape index: {}]
  %s8 = inlined_call_operand.hbm [shape: f32[1,32], index: 8, kind: input, shape index: {}]
  %s9 = inlined_call_operand.hbm [shape: bf16[32,128], index: 9, kind: input, shape index: {}]
  %s10 = inlined_call_operand.vmem [shape: f32[32,128], index: 10, kind: input, shape index: {}]
  %s11 = inlined_call_operand.vmem [shape: f32[1,128], index: 11, kind: input, shape index: {}]
  %s12 = inlined_call_operand.vmem [shape: bf16[32,2], index: 12, kind: input, shape index: {}]
  %s13 = inlined_call_operand.vmem [shape: f32[1,2], index: 13, kind: input, shape index: {}]
  %s14 = inlined_call_operand.hbm [shape: f32[2,10], index: 14, kind: output, shape index: {}]
  %s15 = sld [smem:[#allocation0]]
  $region94: #{tpu_custom_call.1} parent=0
    _
  %s17 = ssub.s32 1, %s15
  %s18 = scalar_select 0, %s17, %s15
  $region1: #{tpu_custom_call.1} parent=0
    #allocation2 [shape = 'u8[6144]{0}', space=vmem, size = 0x1800, scoped, tag = 'input window, operand 2, single buffered']
    #allocation3 [shape = 's32[1]{0}', space=sflag, size = 0x4, scoped, tag = 'scoped memory for tpu_custom_call.1']
    #allocation4 [shape = 's32[1]{0}', space=sflag, size = 0x4, scoped, tag = 'scoped memory for tpu_custom_call.1']
    #allocation5 [shape = 'u8[8192]{0}', space=vmem, size = 0x2000, scoped, tag = 'input window, operand 4, single buffered']
    #allocation6 [shape = 's32[1]{0}', space=sflag, size = 0x4, scoped, tag = 'scoped memory for tpu_custom_call.1']
    #allocation7 [shape = 'u8[512]{0}', space=vmem, size = 0x400, scoped, tag = 'input window, operand 5, single buffered']
    #allocation8 [shape = 'u8[8192]{0}', space=vmem, size = 0x2000, scoped, tag = 'input window, operand 6, single buffered']
    #allocation9 [shape = 's32[1]{0}', space=sflag, size = 0x4, scoped, tag = 'scoped memory for tpu_custom_call.1']
    #allocation10 [shape = 'u8[8192]{0}', space=vmem, size = 0x2000, scoped, tag = 'input window, operand 7, single buffered']
    #allocation11 [shape = 'u8[512]{0}', space=vmem, size = 0x400, scoped, tag = 'input window, operand 8, single buffered']
    #allocation12 [shape = 's32[1]{0}', space=sflag, size = 0x4, scoped, tag = 'scoped memory for tpu_custom_call.1']
    #allocation13 [shape = 'u8[8192]{0}', space=vmem, size = 0x2000, scoped, tag = 'input window, operand 9, single buffered']
    #allocation14 [shape = 'u8[1024]{0}', space=vmem, size = 0x400, scoped, tag = 'output window, operand 0, single buffered']
    %19 = vsyncpa [#allocation3], 0
    %20 = vsyncpa [#allocation6], 0
    %21 = vsyncpa [#allocation9], 0
    %22 = vsyncpa [#allocation12], 0
    %23 = vsyncpa [#allocation4], 0
    // Predicated region
    $region2: #{tpu_custom_call.1} parent=1 // pred_check
      _
    $region3: #{tpu_custom_call.1} parent=1 // pred_check_branch
      %25 = sbr.rel (0) target = $region5
    $region4: #{tpu_custom_call.1} parent=1 // pred_region
      _
    $region5: #{tpu_custom_call.1} parent=1 // pred_fallthru
      _
    // Predicated region
    $region6: #{tpu_custom_call.1} parent=1 // pred_check
      _
    $region7: #{tpu_custom_call.1} parent=1 // pred_check_branch
      %27 = sbr.rel (0) target = $region9
    $region8: #{tpu_custom_call.1} parent=1 // pred_region
      _
    $region9: #{tpu_custom_call.1} parent=1 // pred_fallthru
      _
    // Predicated region
    $region10: #{tpu_custom_call.1} parent=1 // pred_check
      _
    $region11: #{tpu_custom_call.1} parent=1 // pred_check_branch
      %29 = sbr.rel (0) target = $region13
    $region12: #{tpu_custom_call.1} parent=1 // pred_region
      %s31 = ssub.s32 192, 192
      %32 = vsyncadd [#allocation3], %s31
      %s33 = sshll.u32 [#allocation2], 4
      %s34 = int_to_ptr.vmem [resolvable:$true] %s33
      %39 = dma.hbm_to_vmem [thread:$0]  %s2, 192, %s34, [#allocation3], 64, 64, 4
    $region13: #{tpu_custom_call.1} parent=1 // pred_fallthru
      _
    // Predicated region
    $region14: #{tpu_custom_call.1} parent=1 // pred_check
      _
    $region15: #{tpu_custom_call.1} parent=1 // pred_check_branch
      %41 = sbr.rel (0) target = $region17
    $region16: #{tpu_custom_call.1} parent=1 // pred_region
      _
    $region17: #{tpu_custom_call.1} parent=1 // pred_fallthru
      _
    // Predicated region
    $region18: #{tpu_custom_call.1} parent=1 // pred_check
      _
    $region19: #{tpu_custom_call.1} parent=1 // pred_check_branch
      %43 = sbr.rel (0) target = $region21
    $region20: #{tpu_custom_call.1} parent=1 // pred_region
      %s45 = ssub.s32 256, 256
      %46 = vsyncadd [#allocation6], %s45
      %s47 = sshll.u32 [#allocation5], 4
      %s48 = int_to_ptr.vmem [resolvable:$true] %s47
      %53 = dma.hbm_to_vmem [thread:$0]  %s4, 256, %s48, [#allocation6], 64, 64, 4
    $region21: #{tpu_custom_call.1} parent=1 // pred_fallthru
      _
    // Predicated region
    $region22: #{tpu_custom_call.1} parent=1 // pred_check
      _
    $region23: #{tpu_custom_call.1} parent=1 // pred_check_branch
      %55 = sbr.rel (0) target = $region25
    $region24: #{tpu_custom_call.1} parent=1 // pred_region
      %s57 = ssub.s32 16, 16
      %58 = vsyncadd [#allocation6], %s57
      %s60 = sshll.u32 [#allocation7], 4
      %s61 = int_to_ptr.vmem [resolvable:$true] %s60
      %63 = dma.hbm_to_vmem [thread:$0]  %s5, 16, %s61, [#allocation6]
    $region25: #{tpu_custom_call.1} parent=1 // pred_fallthru
      _
    // Predicated region
    $region26: #{tpu_custom_call.1} parent=1 // pred_check
      _
    $region27: #{tpu_custom_call.1} parent=1 // pred_check_branch
      %65 = sbr.rel (0) target = $region29
    $region28: #{tpu_custom_call.1} parent=1 // pred_region
      %s67 = ssub.s32 256, 256
      %68 = vsyncadd [#allocation9], %s67
      %s69 = sshll.u32 [#allocation8], 4
      %s70 = int_to_ptr.vmem [resolvable:$true] %s69
      %75 = dma.hbm_to_vmem [thread:$0]  %s6, 256, %s70, [#allocation9], 64, 64, 4
    $region29: #{tpu_custom_call.1} parent=1 // pred_fallthru
      _
    // Predicated region
    $region30: #{tpu_custom_call.1} parent=1 // pred_check
      _
    $region31: #{tpu_custom_call.1} parent=1 // pred_check_branch
      %77 = sbr.rel (0) target = $region33
    $region32: #{tpu_custom_call.1} parent=1 // pred_region
      %s79 = ssub.s32 256, 256
      %80 = vsyncadd [#allocation9], %s79
      %s81 = sshll.u32 [#allocation10], 4
      %s82 = int_to_ptr.vmem [resolvable:$true] %s81
      %87 = dma.hbm_to_vmem [thread:$0]  %s7, 256, %s82, [#allocation9], 64, 64, 4
    $region33: #{tpu_custom_call.1} parent=1 // pred_fallthru
      _
    // Predicated region
    $region34: #{tpu_custom_call.1} parent=1 // pred_check
      _
    $region35: #{tpu_custom_call.1} parent=1 // pred_check_branch
      %89 = sbr.rel (0) target = $region37
    $region36: #{tpu_custom_call.1} parent=1 // pred_region
      %s91 = ssub.s32 16, 16
      %92 = vsyncadd [#allocation12], %s91
      %s94 = sshll.u32 [#allocation11], 4
      %s95 = int_to_ptr.vmem [resolvable:$true] %s94
      %97 = dma.hbm_to_vmem [thread:$0]  %s8, 16, %s95, [#allocation12]
    $region37: #{tpu_custom_call.1} parent=1 // pred_fallthru
      _
    // Predicated region
    $region38: #{tpu_custom_call.1} parent=1 // pred_check
      _
    $region39: #{tpu_custom_call.1} parent=1 // pred_check_branch
      %99 = sbr.rel (0) target = $region41
    $region40: #{tpu_custom_call.1} parent=1 // pred_region
      %s101 = ssub.s32 256, 256
      %102 = vsyncadd [#allocation12], %s101
      %s103 = sshll.u32 [#allocation13], 4
      %s104 = int_to_ptr.vmem [resolvable:$true] %s103
      %109 = dma.hbm_to_vmem [thread:$0]  %s9, 256, %s104, [#allocation12], 64, 64, 4
    $region41: #{tpu_custom_call.1} parent=1 // pred_fallthru
      _
    // Predicated region
    $region42: #{tpu_custom_call.1} parent=1 // pred_check
      _
    $region43: #{tpu_custom_call.1} parent=1 // pred_check_branch
      %111 = sbr.rel (0) target = $region45
    $region44: #{tpu_custom_call.1} parent=1 // pred_region
      _
    $region45: #{tpu_custom_call.1} parent=1 // pred_fallthru
      _
    // Predicated region
    $region46: #{tpu_custom_call.1} parent=1 // pred_check
      _
    $region47: #{tpu_custom_call.1} parent=1 // pred_check_branch
      %113 = sbr.rel (0) target = $region49
    $region48: #{tpu_custom_call.1} parent=1 // pred_region
      _
    $region49: #{tpu_custom_call.1} parent=1 // pred_fallthru
      _
    // Predicated region
    $region50: #{tpu_custom_call.1} parent=1 // pred_check
      _
    $region51: #{tpu_custom_call.1} parent=1 // pred_check_branch
      %115 = sbr.rel (0) target = $region53
    $region52: #{tpu_custom_call.1} parent=1 // pred_region
      _
    $region53: #{tpu_custom_call.1} parent=1 // pred_fallthru
      _
    // Predicated region
    $region54: #{tpu_custom_call.1} parent=1 // pred_check
      _
    $region55: #{tpu_custom_call.1} parent=1 // pred_check_branch
      %117 = sbr.rel (0) target = $region57
    $region56: #{tpu_custom_call.1} parent=1 // pred_region
      _
    $region57: #{tpu_custom_call.1} parent=1 // pred_fallthru
      _
    // Predicated region
    $region58: #{tpu_custom_call.1} parent=1 // pred_check
      _
    $region59: #{tpu_custom_call.1} parent=1 // pred_check_branch
      %119 = sbr.rel (0) target = $region61
    $region60: #{tpu_custom_call.1} parent=1 // pred_region
      %120 = dma.done [#allocation3], 192
    $region61: #{tpu_custom_call.1} parent=1 // pred_fallthru
      _
    // Predicated region
    $region62: #{tpu_custom_call.1} parent=1 // pred_check
      _
    $region63: #{tpu_custom_call.1} parent=1 // pred_check_branch
      %122 = sbr.rel (0) target = $region65
    $region64: #{tpu_custom_call.1} parent=1 // pred_region
      %123 = dma.done [#allocation6], 256
    $region65: #{tpu_custom_call.1} parent=1 // pred_fallthru
      _
    // Predicated region
    $region66: #{tpu_custom_call.1} parent=1 // pred_check
      _
    $region67: #{tpu_custom_call.1} parent=1 // pred_check_branch
      %125 = sbr.rel (0) target = $region69
    $region68: #{tpu_custom_call.1} parent=1 // pred_region
      %126 = dma.done [#allocation6], 16
    $region69: #{tpu_custom_call.1} parent=1 // pred_fallthru
      _
    // Predicated region
    $region70: #{tpu_custom_call.1} parent=1 // pred_check
      _
    $region71: #{tpu_custom_call.1} parent=1 // pred_check_branch
      %128 = sbr.rel (0) target = $region73
    $region72: #{tpu_custom_call.1} parent=1 // pred_region
      %129 = dma.done [#allocation9], 256
    $region73: #{tpu_custom_call.1} parent=1 // pred_fallthru
      _
    // Predicated region
    $region74: #{tpu_custom_call.1} parent=1 // pred_check
      _
    $region75: #{tpu_custom_call.1} parent=1 // pred_check_branch
      %131 = sbr.rel (0) target = $region77
    $region76: #{tpu_custom_call.1} parent=1 // pred_region
      %132 = dma.done [#allocation9], 256
    $region77: #{tpu_custom_call.1} parent=1 // pred_fallthru
      _
    // Predicated region
    $region78: #{tpu_custom_call.1} parent=1 // pred_check
      _
    $region79: #{tpu_custom_call.1} parent=1 // pred_check_branch
      %134 = sbr.rel (0) target = $region81
    $region80: #{tpu_custom_call.1} parent=1 // pred_region
      %135 = dma.done [#allocation12], 16
    $region81: #{tpu_custom_call.1} parent=1 // pred_fallthru
      _
    // Predicated region
    $region82: #{tpu_custom_call.1} parent=1 // pred_check
      _
    $region83: #{tpu_custom_call.1} parent=1 // pred_check_branch
      %137 = sbr.rel (0) target = $region85
    $region84: #{tpu_custom_call.1} parent=1 // pred_region
      %138 = dma.done [#allocation12], 256
    $region85: #{tpu_custom_call.1} parent=1 // pred_fallthru
      _
    %v140 = vld [vmem:[%s0] sm:$0x1]
    %v141 = vld [vmem:[%s1] sm:$0x1]
    %v142 = vld [vmem:[#allocation2] sm:$0xf]
    %v143 = vld [vmem:[#allocation2 + $0x4] sm:$0xf]
    %v144 = vld [vmem:[#allocation2 + $0x8] sm:$0x7]
    %v145 = vld [vmem:[%s3] sm:$0x1]
    %v147 = vlaneseq
    %v148 = vshrl.u32 %v147, 7
    %v149 = vsub.s32 0, %v148
    %v150 = vrot.slane %v145, %v149
    %v155 = vunpack.c.l.b16 %v142
    %v156 = vunpack.c.l.b16 %v143
    %v157 = vunpack.c.l.b16 %v144
    %v158 = vpack.c.b16 %v156, %v155
    %v159 = vpack.c.b16 %v157, %v157
    %vm161 = vcmask 179200
    %v163 = vsel %vm161, %v141, 0
    %vm165 = vcmask 1042432
    %v167 = vsel %vm165, %v159, 0
    %169 = vmatprep.subr.bf16.mxu0 0
    %170 = vmatpush1.bf16.msra.mxu0 0
    %171 = vmatprep.subr.bf16.mxu0 0
    %172 = vmatpush1.bf16.msra.mxu0 0
    %173 = vmatprep.subr.bf16.mxu0 0
    %174 = vmatpush1.bf16.msra.mxu0 0
    %175 = vmatprep.subr.bf16.mxu0 0
    %176 = vmatpush1.bf16.msra.mxu0 0
    %177 = vmatprep.subr.bf16.mxu0 0
    %178 = vmatpush1.bf16.msra.mxu0 0
    %179 = vmatprep.subr.bf16.mxu0 0
    %180 = vmatpush1.bf16.msra.mxu0 0
    %181 = vmatprep.subr.bf16.mxu0 0
    %182 = vmatpush1.bf16.msra.mxu0 %v167
    %183 = vmatprep.subr.bf16.mxu0 0
    %184 = vmatpush1.bf16.msra.mxu0 %v158
    %185 = vmatprep.subr.bf16.mxu0 0
    %186 = vmatpush2.bf16.msra.mxu0 0
    %187 = vmatprep.subr.bf16.mxu0 0
    %188 = vmatpush2.bf16.msra.mxu0 0
    %189 = vmatprep.subr.bf16.mxu0 0
    %190 = vmatpush2.bf16.msra.mxu0 0
    %191 = vmatprep.subr.bf16.mxu0 0
    %192 = vmatpush2.bf16.msra.mxu0 0
    %193 = vmatprep.subr.bf16.mxu0 0
    %194 = vmatpush2.bf16.msra.mxu0 0
    %195 = vmatprep.subr.bf16.mxu0 0
    %196 = vmatpush2.bf16.msra.mxu0 0
    %197 = vmatprep.subr.bf16.mxu0 0
    %198 = vmatpush2.bf16.msra.mxu0 0
    %199 = vmatprep.subr.bf16.mxu0 0
    %200 = vmatpush2.bf16.msra.mxu0 0
    %201 = vmatprep.mubr.bf16.mxu0 0
    %202 = vmatmul.mubr.bf16.gmra.mxu0 %v163
    %v203 = vpop.f32.mrf.mxu0
    %v204 = vadd.f32 %v150, %v203
    %v205 = vpop.f32.mrf.mxu0
    %v206 = vpop.f32.mrf.mxu0
    %v207 = vpop.f32.mrf.mxu0
    %208 = vdwg.mxu0
    %v209 = vld [vmem:[#allocation5] sm:$0xf]
    %v210 = vld [vmem:[#allocation5 + $0x4] sm:$0xf]
    %v211 = vld [vmem:[#allocation5 + $0x8] sm:$0xf]
    %v212 = vld [vmem:[#allocation5 + $0xc] sm:$0xf]
    %v213 = vld [vmem:[#allocation7] sm:$0x1]
    %v215 = vlaneseq
    %v216 = vshrl.u32 %v215, 7
    %v217 = vsub.s32 0, %v216
    %v218 = vrot.slane %v213, %v217
    %v224 = vunpack.c.l.b16 %v209
    %v225 = vunpack.c.l.b16 %v210
    %v226 = vunpack.c.l.b16 %v211
    %v227 = vunpack.c.l.b16 %v212
    %v228 = vpack.c.b16 %v225, %v224
    %v229 = vpack.c.b16 %v227, %v226
    %vm232 = vcmask 261120
    %v234 = vsel %vm232, %v140, 0
    %236 = vmatprep.subr.bf16.mxu0 0
    %237 = vmatpush1.bf16.msra.mxu0 0
    %238 = vmatprep.subr.bf16.mxu0 0
    %239 = vmatpush1.bf16.msra.mxu0 0
    %240 = vmatprep.subr.bf16.mxu0 0
    %241 = vmatpush1.bf16.msra.mxu0 0
    %242 = vmatprep.subr.bf16.mxu0 0
    %243 = vmatpush1.bf16.msra.mxu0 0
    %244 = vmatprep.subr.bf16.mxu0 0
    %245 = vmatpush1.bf16.msra.mxu0 0
    %246 = vmatprep.subr.bf16.mxu0 0
    %247 = vmatpush1.bf16.msra.mxu0 0
    %248 = vmatprep.subr.bf16.mxu0 0
    %249 = vmatpush1.bf16.msra.mxu0 %v229
    %250 = vmatprep.subr.bf16.mxu0 0
    %251 = vmatpush1.bf16.msra.mxu0 %v228
    %252 = vmatprep.subr.bf16.mxu0 0
    %253 = vmatpush2.bf16.msra.mxu0 0
    %254 = vmatprep.subr.bf16.mxu0 0
    %255 = vmatpush2.bf16.msra.mxu0 0
    %256 = vmatprep.subr.bf16.mxu0 0
    %257 = vmatpush2.bf16.msra.mxu0 0
    %258 = vmatprep.subr.bf16.mxu0 0
    %259 = vmatpush2.bf16.msra.mxu0 0
    %260 = vmatprep.subr.bf16.mxu0 0
    %261 = vmatpush2.bf16.msra.mxu0 0
    %262 = vmatprep.subr.bf16.mxu0 0
    %263 = vmatpush2.bf16.msra.mxu0 0
    %264 = vmatprep.subr.bf16.mxu0 0
    %265 = vmatpush2.bf16.msra.mxu0 0
    %266 = vmatprep.subr.bf16.mxu0 0
    %267 = vmatpush2.bf16.msra.mxu0 0
    %268 = vmatprep.mubr.bf16.mxu0 0
    %269 = vmatmul.mubr.bf16.gmra.mxu0 %v234
    %v270 = vpop.f32.mrf.mxu0
    %v271 = vadd.f32 %v218, %v270
    %v272 = vpop.f32.mrf.mxu0
    %v273 = vpop.f32.mrf.mxu0
    %v274 = vpop.f32.mrf.mxu0
    %275 = vdwg.mxu0
    %v276 = vld [vmem:[#allocation13] sm:$0xf]
    %v277 = vld [vmem:[#allocation13 + $0x4] sm:$0xf]
    %v278 = vld [vmem:[#allocation13 + $0x8] sm:$0xf]
    %v279 = vld [vmem:[#allocation13 + $0xc] sm:$0xf]
    %v280 = vld [vmem:[#allocation8] sm:$0xf]
    %v281 = vld [vmem:[#allocation8 + $0x4] sm:$0xf]
    %v282 = vld [vmem:[#allocation8 + $0x8] sm:$0xf]
    %v283 = vld [vmem:[#allocation8 + $0xc] sm:$0xf]
    %v284 = vld [vmem:[#allocation11] sm:$0x1]
    %v286 = vlaneseq
    %v287 = vshrl.u32 %v286, 7
    %v288 = vsub.s32 0, %v287
    %v289 = vrot.slane %v284, %v288
    %v295 = vunpack.c.l.b16 %v280
    %v296 = vunpack.c.l.b16 %v281
    %v297 = vunpack.c.l.b16 %v282
    %v298 = vunpack.c.l.b16 %v283
    %v299 = vpack.c.b16 %v296, %v295
    %v300 = vpack.c.b16 %v298, %v297
    %303 = vmatprep.subr.bf16.mxu0 0
    %304 = vmatpush1.bf16.msra.mxu0 0
    %305 = vmatprep.subr.bf16.mxu0 0
    %306 = vmatpush1.bf16.msra.mxu0 0
    %307 = vmatprep.subr.bf16.mxu0 0
    %308 = vmatpush1.bf16.msra.mxu0 0
    %309 = vmatprep.subr.bf16.mxu0 0
    %310 = vmatpush1.bf16.msra.mxu0 0
    %311 = vmatprep.subr.bf16.mxu0 0
    %312 = vmatpush1.bf16.msra.mxu0 0
    %313 = vmatprep.subr.bf16.mxu0 0
    %314 = vmatpush1.bf16.msra.mxu0 0
    %315 = vmatprep.subr.bf16.mxu0 0
    %316 = vmatpush1.bf16.msra.mxu0 %v300
    %317 = vmatprep.subr.bf16.mxu0 0
    %318 = vmatpush1.bf16.msra.mxu0 %v299
    %319 = vmatprep.subr.bf16.mxu0 0
    %320 = vmatpush2.bf16.msra.mxu0 0
    %321 = vmatprep.subr.bf16.mxu0 0
    %322 = vmatpush2.bf16.msra.mxu0 0
    %323 = vmatprep.subr.bf16.mxu0 0
    %324 = vmatpush2.bf16.msra.mxu0 0
    %325 = vmatprep.subr.bf16.mxu0 0
    %326 = vmatpush2.bf16.msra.mxu0 0
    %327 = vmatprep.subr.bf16.mxu0 0
    %328 = vmatpush2.bf16.msra.mxu0 0
    %329 = vmatprep.subr.bf16.mxu0 0
    %330 = vmatpush2.bf16.msra.mxu0 0
    %331 = vmatprep.subr.bf16.mxu0 0
    %332 = vmatpush2.bf16.msra.mxu0 0
    %333 = vmatprep.subr.bf16.mxu0 0
    %334 = vmatpush2.bf16.msra.mxu0 0
    %335 = vmatprep.mubr.bf16.mxu0 0
    %336 = vmatmul.mubr.bf16.gmra.mxu0 %v234
    %v337 = vpop.f32.mrf.mxu0
    %v338 = vadd.f32 %v289, %v337
    %v339 = vpop.f32.mrf.mxu0
    %v340 = vpop.f32.mrf.mxu0
    %v341 = vpop.f32.mrf.mxu0
    %342 = vdwg.mxu0
    %v343 = vpack.c.bf16 %v338, %v338
    %v344 = vld [vmem:[%s11] sm:$0x1]
    %v346 = vlaneseq
    %v347 = vshrl.u32 %v346, 7
    %v348 = vsub.s32 0, %v347
    %v349 = vrot.slane %v344, %v348
    %v355 = vunpack.c.l.b16 %v276
    %v356 = vunpack.c.l.b16 %v277
    %v357 = vunpack.c.l.b16 %v278
    %v358 = vunpack.c.l.b16 %v279
    %v359 = vpack.c.b16 %v356, %v355
    %v360 = vpack.c.b16 %v358, %v357
    %v364 = vsel %vm232, %v343, 0
    %366 = vmatprep.subr.bf16.mxu0 0
    %367 = vmatpush1.bf16.msra.mxu0 0
    %368 = vmatprep.subr.bf16.mxu0 0
    %369 = vmatpush1.bf16.msra.mxu0 0
    %370 = vmatprep.subr.bf16.mxu0 0
    %371 = vmatpush1.bf16.msra.mxu0 0
    %372 = vmatprep.subr.bf16.mxu0 0
    %373 = vmatpush1.bf16.msra.mxu0 0
    %374 = vmatprep.subr.bf16.mxu0 0
    %375 = vmatpush1.bf16.msra.mxu0 0
    %376 = vmatprep.subr.bf16.mxu0 0
    %377 = vmatpush1.bf16.msra.mxu0 0
    %378 = vmatprep.subr.bf16.mxu0 0
    %379 = vmatpush1.bf16.msra.mxu0 %v360
    %380 = vmatprep.subr.bf16.mxu0 0
    %381 = vmatpush1.bf16.msra.mxu0 %v359
    %382 = vmatprep.subr.bf16.mxu0 0
    %383 = vmatpush2.bf16.msra.mxu0 0
    %384 = vmatprep.subr.bf16.mxu0 0
    %385 = vmatpush2.bf16.msra.mxu0 0
    %386 = vmatprep.subr.bf16.mxu0 0
    %387 = vmatpush2.bf16.msra.mxu0 0
    %388 = vmatprep.subr.bf16.mxu0 0
    %389 = vmatpush2.bf16.msra.mxu0 0
    %390 = vmatprep.subr.bf16.mxu0 0
    %391 = vmatpush2.bf16.msra.mxu0 0
    %392 = vmatprep.subr.bf16.mxu0 0
    %393 = vmatpush2.bf16.msra.mxu0 0
    %394 = vmatprep.subr.bf16.mxu0 0
    %395 = vmatpush2.bf16.msra.mxu0 0
    %396 = vmatprep.subr.bf16.mxu0 0
    %397 = vmatpush2.bf16.msra.mxu0 0
    %398 = vmatprep.mubr.bf16.mxu0 0
    %399 = vmatmul.mubr.bf16.gmra.mxu0 %v364
    %v400 = vpop.f32.mrf.mxu0
    %v401 = vadd.f32 %v349, %v400
    %v402 = vpop.f32.mrf.mxu0
    %v403 = vpop.f32.mrf.mxu0
    %v404 = vpop.f32.mrf.mxu0
    %405 = vdwg.mxu0
    %v406 = vld [vmem:[#allocation10] sm:$0xf]
    %v407 = vld [vmem:[#allocation10 + $0x4] sm:$0xf]
    %v408 = vld [vmem:[#allocation10 + $0x8] sm:$0xf]
    %v409 = vld [vmem:[#allocation10 + $0xc] sm:$0xf]
    %v410 = vld [vmem:[%s10] sm:$0xff]
    %v411 = vld [vmem:[%s10 + $0x8] sm:$0xff]
    %v412 = vld [vmem:[%s10 + $0x10] sm:$0xff]
    %v413 = vld [vmem:[%s10 + $0x18] sm:$0xff]
    %v418 = vunpack.c.l.b16 %v406
    %v419 = vunpack.c.l.b16 %v407
    %v420 = vunpack.c.l.b16 %v408
    %v421 = vunpack.c.l.b16 %v409
    %v422 = vpack.c.b16 %v419, %v418
    %v423 = vpack.c.b16 %v421, %v420
    %v425 = vsel %vm232, %v422, 0
    %v428 = vsel %vm232, %v423, 0
    %430 = vmatprep.subr.bf16.mxu0 0
    %431 = vmatpush1.bf16.msra.mxu0 0
    %432 = vmatprep.subr.bf16.mxu0 0
    %433 = vmatpush1.bf16.msra.mxu0 0
    %434 = vmatprep.subr.bf16.mxu0 0
    %435 = vmatpush1.bf16.msra.mxu0 0
    %436 = vmatprep.subr.bf16.mxu0 0
    %437 = vmatpush1.bf16.msra.mxu0 0
    %438 = vmatprep.subr.bf16.mxu0 0
    %439 = vmatpush1.bf16.msra.mxu0 0
    %440 = vmatprep.subr.bf16.mxu0 0
    %441 = vmatpush1.bf16.msra.mxu0 0
    %442 = vmatprep.subr.bf16.mxu0 0
    %443 = vmatpush1.bf16.msra.mxu0 %v360
    %444 = vmatprep.subr.bf16.mxu0 0
    %445 = vmatpush1.bf16.msra.mxu0 %v359
    %446 = vmatprep.subr.bf16.mxu0 0
    %447 = vmatpush2.bf16.msra.mxu0 0
    %448 = vmatprep.subr.bf16.mxu0 0
    %449 = vmatpush2.bf16.msra.mxu0 0
    %450 = vmatprep.subr.bf16.mxu0 0
    %451 = vmatpush2.bf16.msra.mxu0 0
    %452 = vmatprep.subr.bf16.mxu0 0
    %453 = vmatpush2.bf16.msra.mxu0 0
    %454 = vmatprep.subr.bf16.mxu0 0
    %455 = vmatpush2.bf16.msra.mxu0 0
    %456 = vmatprep.subr.bf16.mxu0 0
    %457 = vmatpush2.bf16.msra.mxu0 0
    %458 = vmatprep.subr.bf16.mxu0 0
    %459 = vmatpush2.bf16.msra.mxu0 0
    %460 = vmatprep.subr.bf16.mxu0 0
    %461 = vmatpush2.bf16.msra.mxu0 0
    %462 = vmatprep.mubr.bf16.mxu0 0
    %463 = vmatmul.mubr.bf16.gmra.mxu0 %v425
    %v464 = vpop.f32.mrf.mxu0
    %v465 = vadd.f32 %v410, %v464
    %v466 = vpop.f32.mrf.mxu0
    %v467 = vpop.f32.mrf.mxu0
    %v468 = vadd.f32 %v411, %v467
    %v469 = vpop.f32.mrf.mxu0
    %470 = vmatprep.mubr.bf16.mxu0 0
    %471 = vmatmul.mubr.bf16.gmra.mxu0 %v428
    %v472 = vpop.f32.mrf.mxu0
    %v473 = vadd.f32 %v412, %v472
    %v474 = vpop.f32.mrf.mxu0
    %v475 = vpop.f32.mrf.mxu0
    %v476 = vadd.f32 %v413, %v475
    %v477 = vpop.f32.mrf.mxu0
    %478 = vdwg.mxu0
    %v479 = vpack.c.bf16 %v468, %v465
    %v480 = vpack.c.bf16 %v476, %v473
    %v481 = vld [vmem:[%s12] sm:$0xf]
    %v482 = vld [vmem:[%s12 + $0x4] sm:$0xf]
    %v483 = vld [vmem:[%s12 + $0x8] sm:$0xf]
    %v484 = vld [vmem:[%s12 + $0xc] sm:$0xf]
    %v485 = vld [vmem:[%s13] sm:$0x1]
    %v486 = vpack.c.bf16 %v204, %v204
    %v488 = vsel %vm232, %v486, 0
    %490 = vmatprep.subr.bf16.mxu0 0
    %491 = vmatpush1.bf16.msra.mxu0 0
    %492 = vmatprep.subr.bf16.mxu0 0
    %493 = vmatpush1.bf16.msra.mxu0 0
    %494 = vmatprep.subr.bf16.mxu0 0
    %495 = vmatpush1.bf16.msra.mxu0 0
    %496 = vmatprep.subr.bf16.mxu0 0
    %497 = vmatpush1.bf16.msra.mxu0 0
    %498 = vmatprep.subr.bf16.mxu0 0
    %499 = vmatpush1.bf16.msra.mxu0 0
    %500 = vmatprep.subr.bf16.mxu0 0
    %501 = vmatpush1.bf16.msra.mxu0 0
    %502 = vmatprep.subr.bf16.mxu0 0
    %503 = vmatpush1.bf16.msra.mxu0 %v480
    %504 = vmatprep.subr.bf16.mxu0 0
    %505 = vmatpush1.bf16.msra.mxu0 %v479
    %506 = vmatprep.subr.bf16.mxu0 0
    %507 = vmatpush2.bf16.msra.mxu0 0
    %508 = vmatprep.subr.bf16.mxu0 0
    %509 = vmatpush2.bf16.msra.mxu0 0
    %510 = vmatprep.subr.bf16.mxu0 0
    %511 = vmatpush2.bf16.msra.mxu0 0
    %512 = vmatprep.subr.bf16.mxu0 0
    %513 = vmatpush2.bf16.msra.mxu0 0
    %514 = vmatprep.subr.bf16.mxu0 0
    %515 = vmatpush2.bf16.msra.mxu0 0
    %516 = vmatprep.subr.bf16.mxu0 0
    %517 = vmatpush2.bf16.msra.mxu0 0
    %518 = vmatprep.subr.bf16.mxu0 0
    %519 = vmatpush2.bf16.msra.mxu0 0
    %520 = vmatprep.subr.bf16.mxu0 0
    %521 = vmatpush2.bf16.msra.mxu0 0
    %522 = vmatprep.mubr.bf16.mxu0 0
    %523 = vmatmul.mubr.bf16.gmra.mxu0 %v488
    %v524 = vpop.f32.mrf.mxu0
    %v525 = vadd.f32 0.0, %v524
    %v526 = vpop.f32.mrf.mxu0
    %v527 = vpop.f32.mrf.mxu0
    %v528 = vpop.f32.mrf.mxu0
    %529 = vdwg.mxu0
    %v530 = vadd.f32 %v401, %v525
    %v531 = vxor.u32 %v530, 2147483648
    %v532 = vmul.f32 %v531, 1.442695
    %v533 = vpow.pop %v532
    %v534 = vadd.f32 %v533, 1.0
    %v535 = vrcp.pop %v534
    %v536 = vmul.f32 1.0, %v535
    %v537 = vtanh.pop %v530
    %539 = vrot.lane.b32.xlu0 %v271, 32
    %v540 = vpop.permute.xlu0 %539
    %v542 = vmul.f32 %v536, %v540
    %544 = vrot.lane.b32.xlu0 %v537, 64
    %v545 = vpop.permute.xlu0 %544
    %v547 = vmul.f32 %v536, %v545
    %549 = vrot.lane.b32.xlu0 %v547, 32
    %v550 = vpop.permute.xlu0 %549
    %v552 = vadd.f32 %v542, %v550
    %v553 = vtanh.pop %v552
    %555 = vrot.lane.b32.xlu0 %v553, 64
    %v556 = vpop.permute.xlu0 %555
    %v558 = vmul.f32 %v536, %v556
    %v559 = vpack.c.bf16 %v558, %v558
    %v561 = vlaneseq
    %v562 = vshrl.u32 %v561, 7
    %v563 = vsub.s32 0, %v562
    %v564 = vrot.slane %v485, %v563
    %567 = vrot.lane.b32.xlu0 %v559, 32
    %v568 = vpop.permute.xlu0 %567
    %v573 = vunpack.c.l.b16 %v481
    %v574 = vunpack.c.l.b16 %v482
    %v575 = vunpack.c.l.b16 %v483
    %v576 = vunpack.c.l.b16 %v484
    %v577 = vpack.c.b16 %v574, %v573
    %v578 = vpack.c.b16 %v576, %v575
    %v582 = vsel %vm232, %v568, 0
    %584 = vmatprep.subr.bf16.mxu0 0
    %585 = vmatpush1.bf16.msra.mxu0 0
    %586 = vmatprep.subr.bf16.mxu0 0
    %587 = vmatpush1.bf16.msra.mxu0 0
    %588 = vmatprep.subr.bf16.mxu0 0
    %589 = vmatpush1.bf16.msra.mxu0 0
    %590 = vmatprep.subr.bf16.mxu0 0
    %591 = vmatpush1.bf16.msra.mxu0 0
    %592 = vmatprep.subr.bf16.mxu0 0
    %593 = vmatpush1.bf16.msra.mxu0 0
    %594 = vmatprep.subr.bf16.mxu0 0
    %595 = vmatpush1.bf16.msra.mxu0 0
    %596 = vmatprep.subr.bf16.mxu0 0
    %597 = vmatpush1.bf16.msra.mxu0 %v578
    %598 = vmatprep.subr.bf16.mxu0 0
    %599 = vmatpush1.bf16.msra.mxu0 %v577
    %600 = vmatprep.subr.bf16.mxu0 0
    %601 = vmatpush2.bf16.msra.mxu0 0
    %602 = vmatprep.subr.bf16.mxu0 0
    %603 = vmatpush2.bf16.msra.mxu0 0
    %604 = vmatprep.subr.bf16.mxu0 0
    %605 = vmatpush2.bf16.msra.mxu0 0
    %606 = vmatprep.subr.bf16.mxu0 0
    %607 = vmatpush2.bf16.msra.mxu0 0
    %608 = vmatprep.subr.bf16.mxu0 0
    %609 = vmatpush2.bf16.msra.mxu0 0
    %610 = vmatprep.subr.bf16.mxu0 0
    %611 = vmatpush2.bf16.msra.mxu0 0
    %612 = vmatprep.subr.bf16.mxu0 0
    %613 = vmatpush2.bf16.msra.mxu0 0
    %614 = vmatprep.subr.bf16.mxu0 0
    %615 = vmatpush2.bf16.msra.mxu0 0
    %616 = vmatprep.mubr.bf16.mxu0 0
    %617 = vmatmul.mubr.bf16.gmra.mxu0 %v582
    %v618 = vpop.f32.mrf.mxu0
    %v619 = vadd.f32 %v564, %v618
    %v620 = vpop.f32.mrf.mxu0
    %v621 = vpop.f32.mrf.mxu0
    %v622 = vpop.f32.mrf.mxu0
    %623 = vdwg.mxu0
    %624 = vmatprep.subr.bf16.mxu0 0
    %625 = vmatpush1.bf16.msra.mxu0 0
    %626 = vmatprep.subr.bf16.mxu0 0
    %627 = vmatpush1.bf16.msra.mxu0 0
    %628 = vmatprep.subr.bf16.mxu0 0
    %629 = vmatpush1.bf16.msra.mxu0 0
    %630 = vmatprep.subr.bf16.mxu0 0
    %631 = vmatpush1.bf16.msra.mxu0 0
    %632 = vmatprep.subr.bf16.mxu0 0
    %633 = vmatpush1.bf16.msra.mxu0 0
    %634 = vmatprep.subr.bf16.mxu0 0
    %635 = vmatpush1.bf16.msra.mxu0 0
    %636 = vmatprep.subr.bf16.mxu0 0
    %637 = vmatpush1.bf16.msra.mxu0 %v480
    %638 = vmatprep.subr.bf16.mxu0 0
    %639 = vmatpush1.bf16.msra.mxu0 %v479
    %640 = vmatprep.subr.bf16.mxu0 0
    %641 = vmatpush2.bf16.msra.mxu0 0
    %642 = vmatprep.subr.bf16.mxu0 0
    %643 = vmatpush2.bf16.msra.mxu0 0
    %644 = vmatprep.subr.bf16.mxu0 0
    %645 = vmatpush2.bf16.msra.mxu0 0
    %646 = vmatprep.subr.bf16.mxu0 0
    %647 = vmatpush2.bf16.msra.mxu0 0
    %648 = vmatprep.subr.bf16.mxu0 0
    %649 = vmatpush2.bf16.msra.mxu0 0
    %650 = vmatprep.subr.bf16.mxu0 0
    %651 = vmatpush2.bf16.msra.mxu0 0
    %652 = vmatprep.subr.bf16.mxu0 0
    %653 = vmatpush2.bf16.msra.mxu0 0
    %654 = vmatprep.subr.bf16.mxu0 0
    %655 = vmatpush2.bf16.msra.mxu0 0
    %656 = vmatprep.mubr.bf16.mxu0 0
    %657 = vmatmul.mubr.bf16.gmra.mxu0 %v582
    %v658 = vpop.f32.mrf.mxu0
    %v659 = vadd.f32 0.0, %v658
    %v660 = vpop.f32.mrf.mxu0
    %v661 = vpop.f32.mrf.mxu0
    %v662 = vpop.f32.mrf.mxu0
    %663 = vdwg.mxu0
    %v664 = vadd.f32 %v401, %v659
    %v665 = vxor.u32 %v664, 2147483648
    %v666 = vmul.f32 %v665, 1.442695
    %v667 = vpow.pop %v666
    %v668 = vadd.f32 %v667, 1.0
    %v669 = vrcp.pop %v668
    %v670 = vmul.f32 1.0, %v669
    %v671 = vtanh.pop %v664
    %v672 = vmul.f32 %v670, %v552
    %674 = vrot.lane.b32.xlu0 %v671, 64
    %v675 = vpop.permute.xlu0 %674
    %v677 = vmul.f32 %v670, %v675
    %679 = vrot.lane.b32.xlu0 %v677, 32
    %v680 = vpop.permute.xlu0 %679
    %v682 = vadd.f32 %v672, %v680
    %v683 = vtanh.pop %v682
    %685 = vrot.lane.b32.xlu0 %v683, 64
    %v686 = vpop.permute.xlu0 %685
    %v688 = vmul.f32 %v670, %v686
    %v689 = vpack.c.bf16 %v688, %v688
    %691 = vrot.lane.b32.xlu0 %v689, 32
    %v692 = vpop.permute.xlu0 %691
    %v694 = vsel %vm232, %v692, 0
    %696 = vmatprep.subr.bf16.mxu0 0
    %697 = vmatpush1.bf16.msra.mxu0 0
    %698 = vmatprep.subr.bf16.mxu0 0
    %699 = vmatpush1.bf16.msra.mxu0 0
    %700 = vmatprep.subr.bf16.mxu0 0
    %701 = vmatpush1.bf16.msra.mxu0 0
    %702 = vmatprep.subr.bf16.mxu0 0
    %703 = vmatpush1.bf16.msra.mxu0 0
    %704 = vmatprep.subr.bf16.mxu0 0
    %705 = vmatpush1.bf16.msra.mxu0 0
    %706 = vmatprep.subr.bf16.mxu0 0
    %707 = vmatpush1.bf16.msra.mxu0 0
    %708 = vmatprep.subr.bf16.mxu0 0
    %709 = vmatpush1.bf16.msra.mxu0 %v578
    %710 = vmatprep.subr.bf16.mxu0 0
    %711 = vmatpush1.bf16.msra.mxu0 %v577
    %712 = vmatprep.subr.bf16.mxu0 0
    %713 = vmatpush2.bf16.msra.mxu0 0
    %714 = vmatprep.subr.bf16.mxu0 0
    %715 = vmatpush2.bf16.msra.mxu0 0
    %716 = vmatprep.subr.bf16.mxu0 0
    %717 = vmatpush2.bf16.msra.mxu0 0
    %718 = vmatprep.subr.bf16.mxu0 0
    %719 = vmatpush2.bf16.msra.mxu0 0
    %720 = vmatprep.subr.bf16.mxu0 0
    %721 = vmatpush2.bf16.msra.mxu0 0
    %722 = vmatprep.subr.bf16.mxu0 0
    %723 = vmatpush2.bf16.msra.mxu0 0
    %724 = vmatprep.subr.bf16.mxu0 0
    %725 = vmatpush2.bf16.msra.mxu0 0
    %726 = vmatprep.subr.bf16.mxu0 0
    %727 = vmatpush2.bf16.msra.mxu0 0
    %728 = vmatprep.mubr.bf16.mxu0 0
    %729 = vmatmul.mubr.bf16.gmra.mxu0 %v694
    %v730 = vpop.f32.mrf.mxu0
    %v731 = vadd.f32 %v564, %v730
    %v732 = vpop.f32.mrf.mxu0
    %v733 = vpop.f32.mrf.mxu0
    %v734 = vpop.f32.mrf.mxu0
    %735 = vdwg.mxu0
    %736 = vmatprep.subr.bf16.mxu0 0
    %737 = vmatpush1.bf16.msra.mxu0 0
    %738 = vmatprep.subr.bf16.mxu0 0
    %739 = vmatpush1.bf16.msra.mxu0 0
    %740 = vmatprep.subr.bf16.mxu0 0
    %741 = vmatpush1.bf16.msra.mxu0 0
    %742 = vmatprep.subr.bf16.mxu0 0
    %743 = vmatpush1.bf16.msra.mxu0 0
    %744 = vmatprep.subr.bf16.mxu0 0
    %745 = vmatpush1.bf16.msra.mxu0 0
    %746 = vmatprep.subr.bf16.mxu0 0
    %747 = vmatpush1.bf16.msra.mxu0 0
    %748 = vmatprep.subr.bf16.mxu0 0
    %749 = vmatpush1.bf16.msra.mxu0 %v480
    %750 = vmatprep.subr.bf16.mxu0 0
    %751 = vmatpush1.bf16.msra.mxu0 %v479
    %752 = vmatprep.subr.bf16.mxu0 0
    %753 = vmatpush2.bf16.msra.mxu0 0
    %754 = vmatprep.subr.bf16.mxu0 0
    %755 = vmatpush2.bf16.msra.mxu0 0
    %756 = vmatprep.subr.bf16.mxu0 0
    %757 = vmatpush2.bf16.msra.mxu0 0
    %758 = vmatprep.subr.bf16.mxu0 0
    %759 = vmatpush2.bf16.msra.mxu0 0
    %760 = vmatprep.subr.bf16.mxu0 0
    %761 = vmatpush2.bf16.msra.mxu0 0
    %762 = vmatprep.subr.bf16.mxu0 0
    %763 = vmatpush2.bf16.msra.mxu0 0
    %764 = vmatprep.subr.bf16.mxu0 0
    %765 = vmatpush2.bf16.msra.mxu0 0
    %766 = vmatprep.subr.bf16.mxu0 0
    %767 = vmatpush2.bf16.msra.mxu0 0
    %768 = vmatprep.mubr.bf16.mxu0 0
    %769 = vmatmul.mubr.bf16.gmra.mxu0 %v694
    %v770 = vpop.f32.mrf.mxu0
    %v771 = vadd.f32 0.0, %v770
    %v772 = vpop.f32.mrf.mxu0
    %v773 = vpop.f32.mrf.mxu0
    %v774 = vpop.f32.mrf.mxu0
    %775 = vdwg.mxu0
    %v776 = vadd.f32 %v401, %v771
    %v777 = vxor.u32 %v776, 2147483648
    %v778 = vmul.f32 %v777, 1.442695
    %v779 = vpow.pop %v778
    %v780 = vadd.f32 %v779, 1.0
    %v781 = vrcp.pop %v780
    %v782 = vmul.f32 1.0, %v781
    %v783 = vtanh.pop %v776
    %v784 = vmul.f32 %v782, %v682
    %786 = vrot.lane.b32.xlu0 %v783, 64
    %v787 = vpop.permute.xlu0 %786
    %v789 = vmul.f32 %v782, %v787
    %791 = vrot.lane.b32.xlu0 %v789, 32
    %v792 = vpop.permute.xlu0 %791
    %v794 = vadd.f32 %v784, %v792
    %v795 = vtanh.pop %v794
    %797 = vrot.lane.b32.xlu0 %v795, 64
    %v798 = vpop.permute.xlu0 %797
    %v800 = vmul.f32 %v782, %v798
    %v801 = vpack.c.bf16 %v800, %v800
    %803 = vrot.lane.b32.xlu0 %v801, 32
    %v804 = vpop.permute.xlu0 %803
    %v806 = vsel %vm232, %v804, 0
    %808 = vmatprep.subr.bf16.mxu0 0
    %809 = vmatpush1.bf16.msra.mxu0 0
    %810 = vmatprep.subr.bf16.mxu0 0
    %811 = vmatpush1.bf16.msra.mxu0 0
    %812 = vmatprep.subr.bf16.mxu0 0
    %813 = vmatpush1.bf16.msra.mxu0 0
    %814 = vmatprep.subr.bf16.mxu0 0
    %815 = vmatpush1.bf16.msra.mxu0 0
    %816 = vmatprep.subr.bf16.mxu0 0
    %817 = vmatpush1.bf16.msra.mxu0 0
    %818 = vmatprep.subr.bf16.mxu0 0
    %819 = vmatpush1.bf16.msra.mxu0 0
    %820 = vmatprep.subr.bf16.mxu0 0
    %821 = vmatpush1.bf16.msra.mxu0 %v578
    %822 = vmatprep.subr.bf16.mxu0 0
    %823 = vmatpush1.bf16.msra.mxu0 %v577
    %824 = vmatprep.subr.bf16.mxu0 0
    %825 = vmatpush2.bf16.msra.mxu0 0
    %826 = vmatprep.subr.bf16.mxu0 0
    %827 = vmatpush2.bf16.msra.mxu0 0
    %828 = vmatprep.subr.bf16.mxu0 0
    %829 = vmatpush2.bf16.msra.mxu0 0
    %830 = vmatprep.subr.bf16.mxu0 0
    %831 = vmatpush2.bf16.msra.mxu0 0
    %832 = vmatprep.subr.bf16.mxu0 0
    %833 = vmatpush2.bf16.msra.mxu0 0
    %834 = vmatprep.subr.bf16.mxu0 0
    %835 = vmatpush2.bf16.msra.mxu0 0
    %836 = vmatprep.subr.bf16.mxu0 0
    %837 = vmatpush2.bf16.msra.mxu0 0
    %838 = vmatprep.subr.bf16.mxu0 0
    %839 = vmatpush2.bf16.msra.mxu0 0
    %840 = vmatprep.mubr.bf16.mxu0 0
    %841 = vmatmul.mubr.bf16.gmra.mxu0 %v806
    %v842 = vpop.f32.mrf.mxu0
    %v843 = vadd.f32 %v564, %v842
    %v844 = vpop.f32.mrf.mxu0
    %v845 = vpop.f32.mrf.mxu0
    %v846 = vpop.f32.mrf.mxu0
    %847 = vdwg.mxu0
    %848 = vmatprep.subr.bf16.mxu0 0
    %849 = vmatpush1.bf16.msra.mxu0 0
    %850 = vmatprep.subr.bf16.mxu0 0
    %851 = vmatpush1.bf16.msra.mxu0 0
    %852 = vmatprep.subr.bf16.mxu0 0
    %853 = vmatpush1.bf16.msra.mxu0 0
    %854 = vmatprep.subr.bf16.mxu0 0
    %855 = vmatpush1.bf16.msra.mxu0 0
    %856 = vmatprep.subr.bf16.mxu0 0
    %857 = vmatpush1.bf16.msra.mxu0 0
    %858 = vmatprep.subr.bf16.mxu0 0
    %859 = vmatpush1.bf16.msra.mxu0 0
    %860 = vmatprep.subr.bf16.mxu0 0
    %861 = vmatpush1.bf16.msra.mxu0 %v480
    %862 = vmatprep.subr.bf16.mxu0 0
    %863 = vmatpush1.bf16.msra.mxu0 %v479
    %864 = vmatprep.subr.bf16.mxu0 0
    %865 = vmatpush2.bf16.msra.mxu0 0
    %866 = vmatprep.subr.bf16.mxu0 0
    %867 = vmatpush2.bf16.msra.mxu0 0
    %868 = vmatprep.subr.bf16.mxu0 0
    %869 = vmatpush2.bf16.msra.mxu0 0
    %870 = vmatprep.subr.bf16.mxu0 0
    %871 = vmatpush2.bf16.msra.mxu0 0
    %872 = vmatprep.subr.bf16.mxu0 0
    %873 = vmatpush2.bf16.msra.mxu0 0
    %874 = vmatprep.subr.bf16.mxu0 0
    %875 = vmatpush2.bf16.msra.mxu0 0
    %876 = vmatprep.subr.bf16.mxu0 0
    %877 = vmatpush2.bf16.msra.mxu0 0
    %878 = vmatprep.subr.bf16.mxu0 0
    %879 = vmatpush2.bf16.msra.mxu0 0
    %880 = vmatprep.mubr.bf16.mxu0 0
    %881 = vmatmul.mubr.bf16.gmra.mxu0 %v806
    %v882 = vpop.f32.mrf.mxu0
    %v883 = vadd.f32 0.0, %v882
    %v884 = vpop.f32.mrf.mxu0
    %v885 = vpop.f32.mrf.mxu0
    %v886 = vpop.f32.mrf.mxu0
    %887 = vdwg.mxu0
    %v888 = vadd.f32 %v401, %v883
    %v889 = vxor.u32 %v888, 2147483648
    %v890 = vmul.f32 %v889, 1.442695
    %v891 = vpow.pop %v890
    %v892 = vadd.f32 %v891, 1.0
    %v893 = vrcp.pop %v892
    %v894 = vmul.f32 1.0, %v893
    %v895 = vtanh.pop %v888
    %v896 = vmul.f32 %v894, %v794
    %898 = vrot.lane.b32.xlu0 %v895, 64
    %v899 = vpop.permute.xlu0 %898
    %v901 = vmul.f32 %v894, %v899
    %903 = vrot.lane.b32.xlu0 %v901, 32
    %v904 = vpop.permute.xlu0 %903
    %v906 = vadd.f32 %v896, %v904
    %v907 = vtanh.pop %v906
    %909 = vrot.lane.b32.xlu0 %v907, 64
    %v910 = vpop.permute.xlu0 %909
    %v912 = vmul.f32 %v894, %v910
    %v913 = vpack.c.bf16 %v912, %v912
    %915 = vrot.lane.b32.xlu0 %v913, 32
    %v916 = vpop.permute.xlu0 %915
    %v918 = vsel %vm232, %v916, 0
    %920 = vmatprep.subr.bf16.mxu0 0
    %921 = vmatpush1.bf16.msra.mxu0 0
    %922 = vmatprep.subr.bf16.mxu0 0
    %923 = vmatpush1.bf16.msra.mxu0 0
    %924 = vmatprep.subr.bf16.mxu0 0
    %925 = vmatpush1.bf16.msra.mxu0 0
    %926 = vmatprep.subr.bf16.mxu0 0
    %927 = vmatpush1.bf16.msra.mxu0 0
    %928 = vmatprep.subr.bf16.mxu0 0
    %929 = vmatpush1.bf16.msra.mxu0 0
    %930 = vmatprep.subr.bf16.mxu0 0
    %931 = vmatpush1.bf16.msra.mxu0 0
    %932 = vmatprep.subr.bf16.mxu0 0
    %933 = vmatpush1.bf16.msra.mxu0 %v578
    %934 = vmatprep.subr.bf16.mxu0 0
    %935 = vmatpush1.bf16.msra.mxu0 %v577
    %936 = vmatprep.subr.bf16.mxu0 0
    %937 = vmatpush2.bf16.msra.mxu0 0
    %938 = vmatprep.subr.bf16.mxu0 0
    %939 = vmatpush2.bf16.msra.mxu0 0
    %940 = vmatprep.subr.bf16.mxu0 0
    %941 = vmatpush2.bf16.msra.mxu0 0
    %942 = vmatprep.subr.bf16.mxu0 0
    %943 = vmatpush2.bf16.msra.mxu0 0
    %944 = vmatprep.subr.bf16.mxu0 0
    %945 = vmatpush2.bf16.msra.mxu0 0
    %946 = vmatprep.subr.bf16.mxu0 0
    %947 = vmatpush2.bf16.msra.mxu0 0
    %948 = vmatprep.subr.bf16.mxu0 0
    %949 = vmatpush2.bf16.msra.mxu0 0
    %950 = vmatprep.subr.bf16.mxu0 0
    %951 = vmatpush2.bf16.msra.mxu0 0
    %952 = vmatprep.mubr.bf16.mxu0 0
    %953 = vmatmul.mubr.bf16.gmra.mxu0 %v918
    %v954 = vpop.f32.mrf.mxu0
    %v955 = vadd.f32 %v564, %v954
    %v956 = vpop.f32.mrf.mxu0
    %v957 = vpop.f32.mrf.mxu0
    %v958 = vpop.f32.mrf.mxu0
    %959 = vdwg.mxu0
    %960 = vmatprep.subr.bf16.mxu0 0
    %961 = vmatpush1.bf16.msra.mxu0 0
    %962 = vmatprep.subr.bf16.mxu0 0
    %963 = vmatpush1.bf16.msra.mxu0 0
    %964 = vmatprep.subr.bf16.mxu0 0
    %965 = vmatpush1.bf16.msra.mxu0 0
    %966 = vmatprep.subr.bf16.mxu0 0
    %967 = vmatpush1.bf16.msra.mxu0 0
    %968 = vmatprep.subr.bf16.mxu0 0
    %969 = vmatpush1.bf16.msra.mxu0 0
    %970 = vmatprep.subr.bf16.mxu0 0
    %971 = vmatpush1.bf16.msra.mxu0 0
    %972 = vmatprep.subr.bf16.mxu0 0
    %973 = vmatpush1.bf16.msra.mxu0 %v480
    %974 = vmatprep.subr.bf16.mxu0 0
    %975 = vmatpush1.bf16.msra.mxu0 %v479
    %976 = vmatprep.subr.bf16.mxu0 0
    %977 = vmatpush2.bf16.msra.mxu0 0
    %978 = vmatprep.subr.bf16.mxu0 0
    %979 = vmatpush2.bf16.msra.mxu0 0
    %980 = vmatprep.subr.bf16.mxu0 0
    %981 = vmatpush2.bf16.msra.mxu0 0
    %982 = vmatprep.subr.bf16.mxu0 0
    %983 = vmatpush2.bf16.msra.mxu0 0
    %984 = vmatprep.subr.bf16.mxu0 0
    %985 = vmatpush2.bf16.msra.mxu0 0
    %986 = vmatprep.subr.bf16.mxu0 0
    %987 = vmatpush2.bf16.msra.mxu0 0
    %988 = vmatprep.subr.bf16.mxu0 0
    %989 = vmatpush2.bf16.msra.mxu0 0
    %990 = vmatprep.subr.bf16.mxu0 0
    %991 = vmatpush2.bf16.msra.mxu0 0
    %992 = vmatprep.mubr.bf16.mxu0 0
    %993 = vmatmul.mubr.bf16.gmra.mxu0 %v918
    %v994 = vpop.f32.mrf.mxu0
    %v995 = vadd.f32 0.0, %v994
    %v996 = vpop.f32.mrf.mxu0
    %v997 = vpop.f32.mrf.mxu0
    %v998 = vpop.f32.mrf.mxu0
    %999 = vdwg.mxu0
    %v1000 = vadd.f32 %v401, %v995
    %v1001 = vxor.u32 %v1000, 2147483648
    %v1002 = vmul.f32 %v1001, 1.442695
    %v1003 = vpow.pop %v1002
    %v1004 = vadd.f32 %v1003, 1.0
    %v1005 = vrcp.pop %v1004
    %v1006 = vmul.f32 1.0, %v1005
    %v1007 = vtanh.pop %v1000
    %v1008 = vmul.f32 %v1006, %v906
    %1010 = vrot.lane.b32.xlu0 %v1007, 64
    %v1011 = vpop.permute.xlu0 %1010
    %v1013 = vmul.f32 %v1006, %v1011
    %1015 = vrot.lane.b32.xlu0 %v1013, 32
    %v1016 = vpop.permute.xlu0 %1015
    %v1018 = vadd.f32 %v1008, %v1016
    %v1019 = vtanh.pop %v1018
    %1021 = vrot.lane.b32.xlu0 %v1019, 64
    %v1022 = vpop.permute.xlu0 %1021
    %v1024 = vmul.f32 %v1006, %v1022
    %v1025 = vpack.c.bf16 %v1024, %v1024
    %1027 = vrot.lane.b32.xlu0 %v1025, 32
    %v1028 = vpop.permute.xlu0 %1027
    %v1030 = vsel %vm232, %v1028, 0
    %1032 = vmatprep.subr.bf16.mxu0 0
    %1033 = vmatpush1.bf16.msra.mxu0 0
    %1034 = vmatprep.subr.bf16.mxu0 0
    %1035 = vmatpush1.bf16.msra.mxu0 0
    %1036 = vmatprep.subr.bf16.mxu0 0
    %1037 = vmatpush1.bf16.msra.mxu0 0
    %1038 = vmatprep.subr.bf16.mxu0 0
    %1039 = vmatpush1.bf16.msra.mxu0 0
    %1040 = vmatprep.subr.bf16.mxu0 0
    %1041 = vmatpush1.bf16.msra.mxu0 0
    %1042 = vmatprep.subr.bf16.mxu0 0
    %1043 = vmatpush1.bf16.msra.mxu0 0
    %1044 = vmatprep.subr.bf16.mxu0 0
    %1045 = vmatpush1.bf16.msra.mxu0 %v578
    %1046 = vmatprep.subr.bf16.mxu0 0
    %1047 = vmatpush1.bf16.msra.mxu0 %v577
    %1048 = vmatprep.subr.bf16.mxu0 0
    %1049 = vmatpush2.bf16.msra.mxu0 0
    %1050 = vmatprep.subr.bf16.mxu0 0
    %1051 = vmatpush2.bf16.msra.mxu0 0
    %1052 = vmatprep.subr.bf16.mxu0 0
    %1053 = vmatpush2.bf16.msra.mxu0 0
    %1054 = vmatprep.subr.bf16.mxu0 0
    %1055 = vmatpush2.bf16.msra.mxu0 0
    %1056 = vmatprep.subr.bf16.mxu0 0
    %1057 = vmatpush2.bf16.msra.mxu0 0
    %1058 = vmatprep.subr.bf16.mxu0 0
    %1059 = vmatpush2.bf16.msra.mxu0 0
    %1060 = vmatprep.subr.bf16.mxu0 0
    %1061 = vmatpush2.bf16.msra.mxu0 0
    %1062 = vmatprep.subr.bf16.mxu0 0
    %1063 = vmatpush2.bf16.msra.mxu0 0
    %1064 = vmatprep.mubr.bf16.mxu0 0
    %1065 = vmatmul.mubr.bf16.gmra.mxu0 %v1030
    %v1066 = vpop.f32.mrf.mxu0
    %v1067 = vadd.f32 %v564, %v1066
    %v1068 = vpop.f32.mrf.mxu0
    %v1069 = vpop.f32.mrf.mxu0
    %v1070 = vpop.f32.mrf.mxu0
    %1071 = vdwg.mxu0
    %1073 = vrot.lane.b32.xlu0 %v731, 2
    %v1074 = vpop.permute.xlu0 %1073
    %1077 = vrot.lane.b32.xlu0 %v843, 4
    %v1078 = vpop.permute.xlu0 %1077
    %1081 = vrot.lane.b32.xlu0 %v955, 6
    %v1082 = vpop.permute.xlu0 %1081
    %1085 = vrot.lane.b32.xlu0 %v1067, 8
    %v1086 = vpop.permute.xlu0 %1085
    %vm1088 = vcmask 15360
    %v1089 = vsel %vm1088, %v619, %v1074
    %vm1090 = vcmask 31744
    %v1091 = vsel %vm1090, %v1089, %v1078
    %vm1092 = vcmask 48128
    %v1093 = vsel %vm1092, %v1091, %v1082
    %vm1094 = vcmask 64512
    %v1095 = vsel %vm1094, %v1093, %v1086
    %vm1096 = vcmask 74752
    %1097 = vst.msk [vmem:[#allocation14] sm:$0x3] %vm1096, %v1095
    // Predicated region
    $region86: #{tpu_custom_call.1} parent=1 // pred_check
      _
    $region87: #{tpu_custom_call.1} parent=1 // pred_check_branch
      %1099 = sbr.rel (0) target = $region89
    $region88: #{tpu_custom_call.1} parent=1 // pred_region
      %s1101 = ssub.s32 32, 32
      %1102 = vsyncadd [#allocation4], %s1101
      %s1104 = sshll.u32 [#allocation14], 4
      %s1105 = int_to_ptr.vmem [resolvable:$true] %s1104
      %1107 = dma.vmem_to_hbm [thread:$0]  %s1105, 32, %s14, [#allocation4]
    $region89: #{tpu_custom_call.1} parent=1 // pred_fallthru
      _
    // Predicated region
    $region90: #{tpu_custom_call.1} parent=1 // pred_check
      _
    $region91: #{tpu_custom_call.1} parent=1 // pred_check_branch
      %1109 = sbr.rel (0) target = $region93
    $region92: #{tpu_custom_call.1} parent=1 // pred_region
      %1110 = dma.done [#allocation4], 32
    $region93: #{tpu_custom_call.1} parent=1 // pred_fallthru
      _
    %1111 = vsyncpa [#allocation3], 1
    %1112 = vsyncpa [#allocation6], 1
    %1113 = vsyncpa [#allocation9], 1
    %1114 = vsyncpa [#allocation12], 1
    %1115 = vsyncpa [#allocation4], 1

</llo_original>
